<compile_context>
chip_gen: v5e
topology: v5e:2x2
jax: 0.10.0
libtpu: 0.0.40
codegen_flags: <defaults>
</compile_context>

<pallas_src>
import math

import jax
import jax.numpy as jnp
from jax.experimental import pallas as pl
from jax.experimental.pallas import tpu as pltpu


_LN_EPS = 1e-5                 # torch.nn.LayerNorm default
_INV_SQRT2 = 1.0 / math.sqrt(2.0)


# -----------------------------------------------------------------------------
# Fused kernel: one batch tile of the entire MLP (+ folded residual skip path)
# -----------------------------------------------------------------------------
def _mlp_fused_kernel(x_ref, w1_ref, b1_ref, g1_ref, be1_ref,
                      w2_ref, b2_ref, wfa_ref, wsk_ref, bout_ref, o_ref):
    x = x_ref[...]                              # [TB, 32] f32
    xb = x.astype(jnp.bfloat16)                 # MXU operands in bf16

    # ---- layer 0: Linear -> LayerNorm -> ReLU (post-matmul math in f32) -----
    h = jnp.dot(xb, w1_ref[...], preferred_element_type=jnp.float32)
    h = h + b1_ref[...]
    mh = jnp.mean(h, axis=-1, keepdims=True)          # two independent lane
    mh2 = jnp.mean(h * h, axis=-1, keepdims=True)     # reductions (XLU overlap)
    var = mh2 - mh * mh                               # biased var, as torch LN
    h = (h - mh) * jax.lax.rsqrt(var + _LN_EPS)
    h = h * g1_ref[...] + be1_ref[...]
    h = jnp.maximum(h, 0.0)

    # ---- layer 1: Linear -> GELU (exact erf, torch.nn.GELU default) ---------
    y = jnp.dot(h.astype(jnp.bfloat16), w2_ref[...],
                preferred_element_type=jnp.float32)
    y = y + b2_ref[...]
    y = 0.5 * y * (1.0 + jax.lax.erf(y * _INV_SQRT2))

    # ---- folded residual skip + final projection ----------------------------
    # skip_final(cat([y, skip_1(x)], 1))
    #   == y @ Wf[:Dout] + x @ (Ws1 @ Wf[Dout:]) + (bs1 @ Wf[Dout:] + bf)
    out = jnp.dot(y.astype(jnp.bfloat16), wfa_ref[...],
                  preferred_element_type=jnp.float32)
    out = out + jnp.dot(xb, wsk_ref[...], preferred_element_type=jnp.float32)
    out = out + bout_ref[...]

    o_ref[...] = out.astype(o_ref.dtype)


# -----------------------------------------------------------------------------
# Wrapper: batch-tiled single pallas_call (no wrapper-side pad / slice)
# -----------------------------------------------------------------------------
def mlp_forward(params, x, *, block_b=None, interpret=False):
    """Equivalent of MLP.forward(features, residual=True) for the fixed config."""
    B, Din = x.shape
    H = params["w1"].shape[1]
    Dout = params["w2"].shape[1]

    # --- batch-tile selection -------------------------------------------------
    # Big default tile amortizes per-grid-step overhead; on v7x keep >=2 grid
    # steps for 2-TC megacore sharding when the batch is large enough to care.
    TB = 4096 if block_b is None else block_b
    TB = max(8, (TB // 8) * 8)                  # sublane (8) alignment
    if B <= TB:
        if B > 1024:                            # enough rows: split for 2 TCs
            TB = max(8, pl.cdiv(pl.cdiv(B, 2), 8) * 8)
        else:
            TB = B                              # single tile == full batch dim
    grid = (pl.cdiv(B, TB),)                    # ragged last block handled by Pallas

    def const(shape):                           # weights/biases: VMEM-resident
        return pl.BlockSpec(shape, lambda i: (0, 0))

    out = pl.pallas_call(
        _mlp_fused_kernel,
        out_shape=jax.ShapeDtypeStruct((B, Dout), x.dtype),
        grid=grid,
        in_specs=[
            pl.BlockSpec((TB, Din), lambda i: (i, 0)),   # x (tiled over batch)
            const((Din, H)),                             # w1
            const((1, H)),                               # b1
            const((1, H)),                               # gamma1
            const((1, H)),                               # beta1
            const((H, Dout)),                            # w2
            const((1, Dout)),                            # b2
            const((Dout, Dout)),                         # skip_final W[:Dout]
            const((Din, Dout)),                          # folded W_skip
            const((1, Dout)),                            # folded output bias
        ],
        out_specs=pl.BlockSpec((TB, Dout), lambda i: (i, 0)),
        # Default scoped-VMEM limits are ample at TB<=4096 (~3 MiB live);
        # bump vmem_limit_bytes only if block_b is raised far beyond that.
        compiler_params=pltpu.CompilerParams(
            dimension_semantics=("parallel",)),          # 2-TC sharding on v7x
        interpret=interpret,
    )(x, params["w1"], params["b1"], params["g1"], params["be1"],
      params["w2"], params["b2"], params["wf_a"], params["w_skip"],
      params["b_out"])

    return out
    # TODO(synk): aggregate='start'/'end' uses net_utils.get_pool (segment mean
    # over `batches`), which is not defined in the reference module; skipped.


# -----------------------------------------------------------------------------
# Deterministic parameter construction (PyTorch-default-style uniform init)
# -----------------------------------------------------------------------------
def _init_linear(key, d_in, d_out):
    kw, kb = jax.random.split(key)
    bound = 1.0 / math.sqrt(d_in)
    w = jax.random.uniform(kw, (d_in, d_out), jnp.float32, -bound, bound)
    b = jax.random.uniform(kb, (1, d_out), jnp.float32, -bound, bound)
    return w, b                                 # weights pre-transposed [Din, Dout]


def build_mlp_params(key, input_dim, hidden_dim, output_dim,
                     w_dtype=jnp.bfloat16):
    k1, k2, k3, k4 = jax.random.split(key, 4)
    w1, b1 = _init_linear(k1, input_dim, hidden_dim)
    w2, b2 = _init_linear(k2, hidden_dim, output_dim)
    ws1, bs1 = _init_linear(k3, input_dim, output_dim)
    wf, bf = _init_linear(k4, 2 * output_dim, output_dim)

    wf_a = wf[:output_dim]                      # multiplies layer-1 output
    wf_b = wf[output_dim:]                      # multiplies skip_1 output
    # Fold the purely linear skip path in f32, single bf16 cast at the end.
    w_skip = ws1 @ wf_b                         # [Din, Dout]
    b_out = bs1 @ wf_b + bf                     # [1,  Dout]

    return dict(
        w1=w1.astype(w_dtype), b1=b1,
        g1=jnp.ones((1, hidden_dim), jnp.float32),       # LayerNorm gamma
        be1=jnp.zeros((1, hidden_dim), jnp.float32),     # LayerNorm beta
        w2=w2.astype(w_dtype), b2=b2,
        wf_a=wf_a.astype(w_dtype),
        w_skip=w_skip.astype(w_dtype),
        b_out=b_out,
    )


# -----------------------------------------------------------------------------
# Pure-JAX reference (same dtype policy) for a correctness sanity check
# -----------------------------------------------------------------------------
def mlp_reference(params, x):
    f32 = jnp.float32
    xb = x.astype(jnp.bfloat16)
    h = jnp.dot(xb, params["w1"], preferred_element_type=f32) + params["b1"]
    mean = jnp.mean(h, axis=-1, keepdims=True)
    var = jnp.mean(h * h, axis=-1, keepdims=True) - mean * mean
    h = (h - mean) * jax.lax.rsqrt(var + _LN_EPS) * params["g1"] + params["be1"]
    h = jnp.maximum(h, 0.0)
    y = jnp.dot(h.astype(jnp.bfloat16), params["w2"],
                preferred_element_type=f32) + params["b2"]
    y = 0.5 * y * (1.0 + jax.lax.erf(y * _INV_SQRT2))
    return (jnp.dot(y.astype(jnp.bfloat16), params["wf_a"],
                    preferred_element_type=f32)
            + jnp.dot(xb, params["w_skip"], preferred_element_type=f32)
            + params["b_out"])


# -----------------------------------------------------------------------------
if __name__ == "__main__":
    # Concrete module config:
    #   layers = [(32, 64, True, 'relu', 'layernorm', 'none', [0]),
    #             (64, 16, True, 'gelu', 'none',      'none', [1])]
    #   aggregate=None, in_dropout=0.0, residual=True (eval -> dropout = id)
    input_dim, hidden_dim, output_dim = 32, 64, 16
    B = 8

    key = jax.random.PRNGKey(0)
    k_x, k_p, k_x2 = jax.random.split(key, 3)
    params = build_mlp_params(k_p, input_dim, hidden_dim, output_dim)

    # Case 1: tiny batch, single tile.
    x = jax.random.normal(k_x, (B, input_dim), jnp.float32)
    out = jax.block_until_ready(mlp_forward(params, x))
    ref = jax.block_until_ready(mlp_reference(params, x))
    assert out.shape == (B, output_dim)
    assert bool(jnp.all(jnp.isfinite(out)))
    assert bool(jnp.allclose(out, ref, rtol=5e-2, atol=5e-2)), \
        float(jnp.max(jnp.abs(out - ref)))

    # Case 2: ragged grid (B not a multiple of the tile) -> exercises masked
    # last-block handling without any wrapper pad/slice.
    B2 = 22
    x2 = jax.random.normal(k_x2, (B2, input_dim), jnp.float32)
    out2 = jax.block_until_ready(mlp_forward(params, x2, block_b=8))
    ref2 = jax.block_until_ready(mlp_reference(params, x2))
    assert out2.shape == (B2, output_dim)
    assert bool(jnp.all(jnp.isfinite(out2)))
    assert bool(jnp.allclose(out2, ref2, rtol=5e-2, atol=5e-2)), \
        float(jnp.max(jnp.abs(out2 - ref2)))

    print("KERNEL_OK")
</pallas_src>

<mosaic_0001>
module attributes {stable_mosaic.version = 11 : i64} {
  func.func @_mlp_fused_kernel(%arg0: i32, %arg1: memref<8x32xf32, #tpu.memory_space<vmem>>, %arg2: memref<32x64xbf16, #tpu.memory_space<vmem>>, %arg3: memref<1x64xf32, #tpu.memory_space<vmem>>, %arg4: memref<1x64xf32, #tpu.memory_space<vmem>>, %arg5: memref<1x64xf32, #tpu.memory_space<vmem>>, %arg6: memref<64x16xbf16, #tpu.memory_space<vmem>>, %arg7: memref<1x16xf32, #tpu.memory_space<vmem>>, %arg8: memref<16x16xbf16, #tpu.memory_space<vmem>>, %arg9: memref<32x16xbf16, #tpu.memory_space<vmem>>, %arg10: memref<1x16xf32, #tpu.memory_space<vmem>>, %arg11: memref<8x16xf32, #tpu.memory_space<vmem>>) attributes {dimension_semantics = [#tpu.dimension_semantics<parallel>], iteration_bounds = array<i64: 1>, scalar_prefetch = 0 : i64, scratch_operands = 0 : i64, tpu.core_type = #tpu.core_type<tc>, window_params = [{transform_indices = @transform_0, window_bounds = array<i64: 8, 32>}, {pipeline_mode = #tpu.pipeline_mode<synchronous>, transform_indices = @transform_1, window_bounds = array<i64: 32, 64>}, {pipeline_mode = #tpu.pipeline_mode<synchronous>, transform_indices = @transform_2, window_bounds = array<i64: 1, 64>}, {pipeline_mode = #tpu.pipeline_mode<synchronous>, transform_indices = @transform_3, window_bounds = array<i64: 1, 64>}, {pipeline_mode = #tpu.pipeline_mode<synchronous>, transform_indices = @transform_4, window_bounds = array<i64: 1, 64>}, {pipeline_mode = #tpu.pipeline_mode<synchronous>, transform_indices = @transform_5, window_bounds = array<i64: 64, 16>}, {pipeline_mode = #tpu.pipeline_mode<synchronous>, transform_indices = @transform_6, window_bounds = array<i64: 1, 16>}, {pipeline_mode = #tpu.pipeline_mode<synchronous>, transform_indices = @transform_7, window_bounds = array<i64: 16, 16>}, {pipeline_mode = #tpu.pipeline_mode<synchronous>, transform_indices = @transform_8, window_bounds = array<i64: 32, 16>}, {pipeline_mode = #tpu.pipeline_mode<synchronous>, transform_indices = @transform_9, window_bounds = array<i64: 1, 16>}, {transform_indices = @transform_10, window_bounds = array<i64: 8, 16>}]} {
    %c0 = arith.constant 0 : index
    %c0_0 = arith.constant 0 : index
    %0 = vector.load %arg1[%c0, %c0_0] : memref<8x32xf32, #tpu.memory_space<vmem>>, vector<8x32xf32>
    %1 = arith.truncf %0 : vector<8x32xf32> to vector<8x32xbf16>
    %c0_1 = arith.constant 0 : index
    %c0_2 = arith.constant 0 : index
    %2 = vector.load %arg2[%c0_1, %c0_2] : memref<32x64xbf16, #tpu.memory_space<vmem>>, vector<32x64xbf16>
    %cst = arith.constant dense<0.000000e+00> : vector<8x64xf32>
    %3 = tpu.matmul %1, %2, %cst {dimension_numbers = #tpu.dot_dimension_numbers<[1], [0], [0], [1], [0, 0, 1, 1], [], []>} : vector<8x32xbf16>, vector<32x64xbf16>, vector<8x64xf32> -> vector<8x64xf32>
    %c0_3 = arith.constant 0 : index
    %c0_4 = arith.constant 0 : index
    %4 = vector.load %arg3[%c0_3, %c0_4] : memref<1x64xf32, #tpu.memory_space<vmem>>, vector<1x64xf32>
    %5 = vector.broadcast %4 : vector<1x64xf32> to vector<8x64xf32>
    %6 = arith.addf %3, %5 : vector<8x64xf32>
    %cst_5 = arith.constant dense<0.000000e+00> : vector<8xf32>
    %7 = vector.multi_reduction <add>, %6, %cst_5 [1] : vector<8x64xf32> to vector<8xf32>
    %8 = vector.shape_cast %7 : vector<8xf32> to vector<8x1xf32>
    %cst_6 = arith.constant 6.400000e+01 : f32
    %9 = vector.broadcast %cst_6 : f32 to vector<8x1xf32>
    %10 = arith.divf %8, %9 : vector<8x1xf32>
    %11 = arith.mulf %6, %6 : vector<8x64xf32>
    %cst_7 = arith.constant dense<0.000000e+00> : vector<8xf32>
    %12 = vector.multi_reduction <add>, %11, %cst_7 [1] : vector<8x64xf32> to vector<8xf32>
    %13 = vector.shape_cast %12 : vector<8xf32> to vector<8x1xf32>
    %cst_8 = arith.constant 6.400000e+01 : f32
    %14 = vector.broadcast %cst_8 : f32 to vector<8x1xf32>
    %15 = arith.divf %13, %14 : vector<8x1xf32>
    %16 = arith.mulf %10, %10 : vector<8x1xf32>
    %17 = arith.subf %15, %16 : vector<8x1xf32>
    %18 = vector.broadcast %10 : vector<8x1xf32> to vector<8x64xf32>
    %19 = arith.subf %6, %18 : vector<8x64xf32>
    %cst_9 = arith.constant 9.99999974E-6 : f32
    %20 = vector.broadcast %cst_9 : f32 to vector<8x1xf32>
    %21 = arith.addf %17, %20 : vector<8x1xf32>
    %22 = math.rsqrt %21 : vector<8x1xf32>
    %23 = vector.broadcast %22 : vector<8x1xf32> to vector<8x64xf32>
    %24 = arith.mulf %19, %23 : vector<8x64xf32>
    %c0_10 = arith.constant 0 : index
    %c0_11 = arith.constant 0 : index
    %25 = vector.load %arg4[%c0_10, %c0_11] : memref<1x64xf32, #tpu.memory_space<vmem>>, vector<1x64xf32>
    %26 = vector.broadcast %25 : vector<1x64xf32> to vector<8x64xf32>
    %27 = arith.mulf %24, %26 : vector<8x64xf32>
    %c0_12 = arith.constant 0 : index
    %c0_13 = arith.constant 0 : index
    %28 = vector.load %arg5[%c0_12, %c0_13] : memref<1x64xf32, #tpu.memory_space<vmem>>, vector<1x64xf32>
    %29 = vector.broadcast %28 : vector<1x64xf32> to vector<8x64xf32>
    %30 = arith.addf %27, %29 : vector<8x64xf32>
    %cst_14 = arith.constant 0.000000e+00 : f32
    %31 = vector.broadcast %cst_14 : f32 to vector<8x64xf32>
    %32 = arith.maximumf %30, %31 : vector<8x64xf32>
    %33 = arith.truncf %32 : vector<8x64xf32> to vector<8x64xbf16>
    %c0_15 = arith.constant 0 : index
    %c0_16 = arith.constant 0 : index
    %34 = vector.load %arg6[%c0_15, %c0_16] : memref<64x16xbf16, #tpu.memory_space<vmem>>, vector<64x16xbf16>
    %cst_17 = arith.constant dense<0.000000e+00> : vector<8x16xf32>
    %35 = tpu.matmul %33, %34, %cst_17 {dimension_numbers = #tpu.dot_dimension_numbers<[1], [0], [0], [1], [0, 0, 1, 1], [], []>} : vector<8x64xbf16>, vector<64x16xbf16>, vector<8x16xf32> -> vector<8x16xf32>
    %c0_18 = arith.constant 0 : index
    %c0_19 = arith.constant 0 : index
    %36 = vector.load %arg7[%c0_18, %c0_19] : memref<1x16xf32, #tpu.memory_space<vmem>>, vector<1x16xf32>
    %37 = vector.broadcast %36 : vector<1x16xf32> to vector<8x16xf32>
    %38 = arith.addf %35, %37 : vector<8x16xf32>
    %cst_20 = arith.constant 5.000000e-01 : f32
    %39 = vector.broadcast %cst_20 : f32 to vector<8x16xf32>
    %40 = arith.mulf %39, %38 : vector<8x16xf32>
    %cst_21 = arith.constant 0.707106769 : f32
    %41 = vector.broadcast %cst_21 : f32 to vector<8x16xf32>
    %42 = arith.mulf %38, %41 : vector<8x16xf32>
    %43 = math.erf %42 : vector<8x16xf32>
    %cst_22 = arith.constant 1.000000e+00 : f32
    %44 = vector.broadcast %cst_22 : f32 to vector<8x16xf32>
    %45 = arith.addf %44, %43 : vector<8x16xf32>
    %46 = arith.mulf %40, %45 : vector<8x16xf32>
    %47 = arith.truncf %46 : vector<8x16xf32> to vector<8x16xbf16>
    %c0_23 = arith.constant 0 : index
    %c0_24 = arith.constant 0 : index
    %48 = vector.load %arg8[%c0_23, %c0_24] : memref<16x16xbf16, #tpu.memory_space<vmem>>, vector<16x16xbf16>
    %cst_25 = arith.constant dense<0.000000e+00> : vector<8x16xf32>
    %49 = tpu.matmul %47, %48, %cst_25 {dimension_numbers = #tpu.dot_dimension_numbers<[1], [0], [0], [1], [0, 0, 1, 1], [], []>} : vector<8x16xbf16>, vector<16x16xbf16>, vector<8x16xf32> -> vector<8x16xf32>
    %c0_26 = arith.constant 0 : index
    %c0_27 = arith.constant 0 : index
    %50 = vector.load %arg9[%c0_26, %c0_27] : memref<32x16xbf16, #tpu.memory_space<vmem>>, vector<32x16xbf16>
    %cst_28 = arith.constant dense<0.000000e+00> : vector<8x16xf32>
    %51 = tpu.matmul %1, %50, %cst_28 {dimension_numbers = #tpu.dot_dimension_numbers<[1], [0], [0], [1], [0, 0, 1, 1], [], []>} : vector<8x32xbf16>, vector<32x16xbf16>, vector<8x16xf32> -> vector<8x16xf32>
    %52 = arith.addf %49, %51 : vector<8x16xf32>
    %c0_29 = arith.constant 0 : index
    %c0_30 = arith.constant 0 : index
    %53 = vector.load %arg10[%c0_29, %c0_30] : memref<1x16xf32, #tpu.memory_space<vmem>>, vector<1x16xf32>
    %54 = vector.broadcast %53 : vector<1x16xf32> to vector<8x16xf32>
    %55 = arith.addf %52, %54 : vector<8x16xf32>
    %c0_31 = arith.constant 0 : index
    %c0_32 = arith.constant 0 : index
    %56 = vector.load %arg11[%c0_31, %c0_32] : memref<8x16xf32, #tpu.memory_space<vmem>>, vector<8x16xf32>
    tpu.vector_store %arg11[%c0_31, %c0_32], %55 {strides = array<i32>} : memref<8x16xf32, #tpu.memory_space<vmem>>, vector<8x16xf32>,
    return
  }
  func.func @transform_0(%arg0: i32) -> (i32, i32) {
    %c0_i32 = arith.constant 0 : i32
    %c0_i32_0 = arith.constant 0 : i32
    return %arg0, %c0_i32 : i32, i32
  }
  func.func @transform_1(%arg0: i32) -> (i32, i32) {
    %c0_i32 = arith.constant 0 : i32
    %c0_i32_0 = arith.constant 0 : i32
    %c0_i32_1 = arith.constant 0 : i32
    return %c0_i32, %c0_i32_0 : i32, i32
  }
  func.func @transform_2(%arg0: i32) -> (i32, i32) {
    %c0_i32 = arith.constant 0 : i32
    %c0_i32_0 = arith.constant 0 : i32
    %c0_i32_1 = arith.constant 0 : i32
    return %c0_i32, %c0_i32_0 : i32, i32
  }
  func.func @transform_3(%arg0: i32) -> (i32, i32) {
    %c0_i32 = arith.constant 0 : i32
    %c0_i32_0 = arith.constant 0 : i32
    %c0_i32_1 = arith.constant 0 : i32
    return %c0_i32, %c0_i32_0 : i32, i32
  }
  func.func @transform_4(%arg0: i32) -> (i32, i32) {
    %c0_i32 = arith.constant 0 : i32
    %c0_i32_0 = arith.constant 0 : i32
    %c0_i32_1 = arith.constant 0 : i32
    return %c0_i32, %c0_i32_0 : i32, i32
  }
  func.func @transform_5(%arg0: i32) -> (i32, i32) {
    %c0_i32 = arith.constant 0 : i32
    %c0_i32_0 = arith.constant 0 : i32
    %c0_i32_1 = arith.constant 0 : i32
    return %c0_i32, %c0_i32_0 : i32, i32
  }
  func.func @transform_6(%arg0: i32) -> (i32, i32) {
    %c0_i32 = arith.constant 0 : i32
    %c0_i32_0 = arith.constant 0 : i32
    %c0_i32_1 = arith.constant 0 : i32
    return %c0_i32, %c0_i32_0 : i32, i32
  }
  func.func @transform_7(%arg0: i32) -> (i32, i32) {
    %c0_i32 = arith.constant 0 : i32
    %c0_i32_0 = arith.constant 0 : i32
    %c0_i32_1 = arith.constant 0 : i32
    return %c0_i32, %c0_i32_0 : i32, i32
  }
  func.func @transform_8(%arg0: i32) -> (i32, i32) {
    %c0_i32 = arith.constant 0 : i32
    %c0_i32_0 = arith.constant 0 : i32
    %c0_i32_1 = arith.constant 0 : i32
    return %c0_i32, %c0_i32_0 : i32, i32
  }
  func.func @transform_9(%arg0: i32) -> (i32, i32) {
    %c0_i32 = arith.constant 0 : i32
    %c0_i32_0 = arith.constant 0 : i32
    %c0_i32_1 = arith.constant 0 : i32
    return %c0_i32, %c0_i32_0 : i32, i32
  }
  func.func @transform_10(%arg0: i32) -> (i32, i32) {
    %c0_i32 = arith.constant 0 : i32
    %c0_i32_0 = arith.constant 0 : i32
    return %arg0, %c0_i32 : i32, i32
  }
}

</mosaic_0001>

<llo_original>
// kernel: tpu_custom_call.1
$region0: #{tpu_custom_call.1}
  #allocation0 [shape = 'u32[]', space=smem, size = 0x4, offset = 0x4, fixed_abs, tag = 'smem constant byte address 0x4 - core index']
  #allocation1 [shape = 'u32[72,128]{1,0:T(1,128)}', space=vmem, size = 0x9000, scoped, tag = 'internal scratch']
  %s0 = inlined_call_operand.vmem [shape: f32[8,32], index: 0, kind: input, shape index: {}]
  %s1 = inlined_call_operand.vmem [shape: bf16[32,64], index: 1, kind: input, shape index: {}]
  %s2 = inlined_call_operand.vmem [shape: f32[1,64], index: 2, kind: input, shape index: {}]
  %s3 = inlined_call_operand.vmem [shape: f32[1,64], index: 3, kind: input, shape index: {}]
  %s4 = inlined_call_operand.vmem [shape: f32[1,64], index: 4, kind: input, shape index: {}]
  %s5 = inlined_call_operand.vmem [shape: bf16[64,16], index: 5, kind: input, shape index: {}]
  %s6 = inlined_call_operand.vmem [shape: f32[1,16], index: 6, kind: input, shape index: {}]
  %s7 = inlined_call_operand.vmem [shape: bf16[16,16], index: 7, kind: input, shape index: {}]
  %s8 = inlined_call_operand.vmem [shape: bf16[32,16], index: 8, kind: input, shape index: {}]
  %s9 = inlined_call_operand.vmem [shape: f32[1,16], index: 9, kind: input, shape index: {}]
  %s10 = inlined_call_operand.hbm [shape: f32[8,16], index: 10, kind: output, shape index: {}]
  %s11 = sld [smem:[#allocation0]]
  $region50: #{tpu_custom_call.1} parent=0
    _
  %s13 = ssub.s32 1, %s11
  %s14 = scalar_select 0, %s13, %s11
  $region1: #{tpu_custom_call.1} parent=0
    #allocation2 [shape = 'u8[4096]{0}', space=vmem, size = 0x1000, scoped, tag = 'output window, operand 0, single buffered']
    #allocation3 [shape = 's32[1]{0}', space=sflag, size = 0x4, scoped, tag = 'scoped memory for tpu_custom_call.1']
    %15 = vsyncpa [#allocation3], 0
    // Predicated region
    $region2: #{tpu_custom_call.1} parent=1 // pred_check
      _
    $region3: #{tpu_custom_call.1} parent=1 // pred_check_branch
      %17 = sbr.rel (0) target = $region5
    $region4: #{tpu_custom_call.1} parent=1 // pred_region
      _
    $region5: #{tpu_custom_call.1} parent=1 // pred_fallthru
      _
    // Predicated region
    $region6: #{tpu_custom_call.1} parent=1 // pred_check
      _
    $region7: #{tpu_custom_call.1} parent=1 // pred_check_branch
      %19 = sbr.rel (0) target = $region9
    $region8: #{tpu_custom_call.1} parent=1 // pred_region
      _
    $region9: #{tpu_custom_call.1} parent=1 // pred_fallthru
      _
    // Predicated region
    $region10: #{tpu_custom_call.1} parent=1 // pred_check
      _
    $region11: #{tpu_custom_call.1} parent=1 // pred_check_branch
      %21 = sbr.rel (0) target = $region13
    $region12: #{tpu_custom_call.1} parent=1 // pred_region
      _
    $region13: #{tpu_custom_call.1} parent=1 // pred_fallthru
      _
    // Predicated region
    $region14: #{tpu_custom_call.1} parent=1 // pred_check
      _
    $region15: #{tpu_custom_call.1} parent=1 // pred_check_branch
      %23 = sbr.rel (0) target = $region17
    $region16: #{tpu_custom_call.1} parent=1 // pred_region
      _
    $region17: #{tpu_custom_call.1} parent=1 // pred_fallthru
      _
    // Predicated region
    $region18: #{tpu_custom_call.1} parent=1 // pred_check
      _
    $region19: #{tpu_custom_call.1} parent=1 // pred_check_branch
      %25 = sbr.rel (0) target = $region21
    $region20: #{tpu_custom_call.1} parent=1 // pred_region
      _
    $region21: #{tpu_custom_call.1} parent=1 // pred_fallthru
      _
    // Predicated region
    $region22: #{tpu_custom_call.1} parent=1 // pred_check
      _
    $region23: #{tpu_custom_call.1} parent=1 // pred_check_branch
      %27 = sbr.rel (0) target = $region25
    $region24: #{tpu_custom_call.1} parent=1 // pred_region
      _
    $region25: #{tpu_custom_call.1} parent=1 // pred_fallthru
      _
    // Predicated region
    $region26: #{tpu_custom_call.1} parent=1 // pred_check
      _
    $region27: #{tpu_custom_call.1} parent=1 // pred_check_branch
      %29 = sbr.rel (0) target = $region29
    $region28: #{tpu_custom_call.1} parent=1 // pred_region
      _
    $region29: #{tpu_custom_call.1} parent=1 // pred_fallthru
      _
    // Predicated region
    $region30: #{tpu_custom_call.1} parent=1 // pred_check
      _
    $region31: #{tpu_custom_call.1} parent=1 // pred_check_branch
      %31 = sbr.rel (0) target = $region33
    $region32: #{tpu_custom_call.1} parent=1 // pred_region
      _
    $region33: #{tpu_custom_call.1} parent=1 // pred_fallthru
      _
    // Predicated region
    $region34: #{tpu_custom_call.1} parent=1 // pred_check
      _
    $region35: #{tpu_custom_call.1} parent=1 // pred_check_branch
      %33 = sbr.rel (0) target = $region37
    $region36: #{tpu_custom_call.1} parent=1 // pred_region
      _
    $region37: #{tpu_custom_call.1} parent=1 // pred_fallthru
      _
    // Predicated region
    $region38: #{tpu_custom_call.1} parent=1 // pred_check
      _
    $region39: #{tpu_custom_call.1} parent=1 // pred_check_branch
      %35 = sbr.rel (0) target = $region41
    $region40: #{tpu_custom_call.1} parent=1 // pred_region
      _
    $region41: #{tpu_custom_call.1} parent=1 // pred_fallthru
      _
    %v37 = vld [vmem:[%s0] sm:$0xff]
    %v38 = vpack.c.bf16 %v37, %v37
    %v39 = vld [vmem:[%s1] sm:$0xf]
    %v40 = vld [vmem:[%s1 + $0x4] sm:$0xf]
    %v41 = vld [vmem:[%s1 + $0x8] sm:$0xf]
    %v42 = vld [vmem:[%s1 + $0xc] sm:$0xf]
    %v43 = vld [vmem:[%s2] sm:$0x1]
    %v45 = vperm.slane %v43, 0
    %v51 = vunpack.c.l.b16 %v39
    %v52 = vunpack.c.l.b16 %v40
    %v53 = vunpack.c.l.b16 %v41
    %v54 = vunpack.c.l.b16 %v42
    %v55 = vpack.c.b16 %v52, %v51
    %v56 = vpack.c.b16 %v54, %v53
    %vm59 = vcmask 261120
    %v61 = vsel %vm59, %v38, 0
    %63 = vmatpush.bf16.msra.mxu0 0
    %64 = vmatpush.bf16.msra.mxu0 0
    %65 = vmatpush.bf16.msra.mxu0 0
    %66 = vmatpush.bf16.msra.mxu0 0
    %67 = vmatpush.bf16.msra.mxu0 0
    %68 = vmatpush.bf16.msra.mxu0 0
    %69 = vmatpush.bf16.msra.mxu0 %v56
    %70 = vmatpush.bf16.msra.mxu0 %v55
    %71 = vmatmul.bf16.gmra.mxu0 %v61
    %v72 = vpop.f32.mrf.mxu0
    %v73 = vadd.f32 %v45, %v72
    %v74 = vpop.f32.mrf.mxu0
    %75 = vdwg.mxu0
    %vm76 = vcmask 523264
    %v77 = vsel %vm76, %v73, 0.0
    %78 = vadd.xlane.f32.xlu0 %v77
    %v79 = vpop.xlane.xlu0 %78
    %v80 = vrcp.pop 64.0
    %v81 = vmul.f32 64.0, %v80
    %v82 = vsub.f32 1.0, %v81
    %v83 = vmul.f32 %v80, %v82
    %v84 = vadd.f32 %v80, %v83
    %vm85 = vweird.f32 %v80
    %v86 = vsel %vm85, %v80, %v84
    %v87 = vmul.f32 %v79, %v86
    %v88 = vmul.f32 %v73, %v73
    %v89 = vsel %vm76, %v88, 0.0
    %90 = vadd.xlane.f32.xlu0 %v89
    %v91 = vpop.xlane.xlu0 %90
    %v92 = vmul.f32 %v91, %v86
    %v93 = vmul.f32 %v87, %v87
    %v94 = vsub.f32 %v92, %v93
    %v95 = vsub.f32 %v73, %v87
    %v96 = vadd.f32 %v94, 1e-05
    %v97 = vrsqrt.pop %v96
    %v98 = vmul.f32 %v97, %v96
    %v99 = vmul.f32 %v98, %v97
    %v100 = vmul.f32 0.5, %v99
    %v101 = vsub.f32 1.5, %v100
    %v102 = vmul.f32 %v97, %v101
    %vm103 = vweird.f32 %v96
    %vm104 = vweird.f32 %v97
    %vm105 = vmor %vm103, %vm104
    %v106 = vsel %vm105, %v97, %v102
    %v107 = vmul.f32 %v95, %v106
    %v108 = vld [vmem:[%s3] sm:$0x1]
    %v110 = vperm.slane %v108, 0
    %v112 = vmul.f32 %v107, %v110
    %v113 = vld [vmem:[%s4] sm:$0x1]
    %v115 = vperm.slane %v113, 0
    %v117 = vadd.f32 %v112, %v115
    %v118 = vmax.f32 %v117, 0.0
    %v119 = vpack.c.bf16 %v118, %v118
    %v120 = vld [vmem:[%s5] sm:$0xf]
    %v121 = vld [vmem:[%s5 + $0x4] sm:$0xf]
    %v122 = vld [vmem:[%s5 + $0x8] sm:$0xf]
    %v123 = vld [vmem:[%s5 + $0xc] sm:$0xf]
    %v124 = vld [vmem:[%s5 + $0x10] sm:$0xf]
    %v125 = vld [vmem:[%s5 + $0x14] sm:$0xf]
    %v126 = vld [vmem:[%s5 + $0x18] sm:$0xf]
    %v127 = vld [vmem:[%s5 + $0x1c] sm:$0xf]
    %v128 = vld [vmem:[%s6] sm:$0x1]
    %v130 = vperm.slane %v128, 0
    %v140 = vunpack.c.l.b16 %v120
    %v141 = vunpack.c.l.b16 %v121
    %v142 = vunpack.c.l.b16 %v122
    %v143 = vunpack.c.l.b16 %v123
    %v144 = vunpack.c.l.b16 %v124
    %v145 = vunpack.c.l.b16 %v125
    %v146 = vunpack.c.l.b16 %v126
    %v147 = vunpack.c.l.b16 %v127
    %v148 = vpack.c.b16 %v141, %v140
    %v149 = vpack.c.b16 %v143, %v142
    %v150 = vpack.c.b16 %v145, %v144
    %v151 = vpack.c.b16 %v147, %v146
    %v157 = vsel %vm76, %v119, 0
    %159 = vmatpush.bf16.msra.mxu0 0
    %160 = vmatpush.bf16.msra.mxu0 0
    %161 = vmatpush.bf16.msra.mxu0 0
    %162 = vmatpush.bf16.msra.mxu0 0
    %163 = vmatpush.bf16.msra.mxu0 %v151
    %164 = vmatpush.bf16.msra.mxu0 %v150
    %165 = vmatpush.bf16.msra.mxu0 %v149
    %166 = vmatpush.bf16.msra.mxu0 %v148
    %167 = vmatmul.bf16.gmra.mxu0 %v157
    %v168 = vpop.f32.mrf.mxu0
    %v169 = vadd.f32 %v130, %v168
    %v170 = vpop.f32.mrf.mxu0
    %171 = vdwg.mxu0
    %v172 = vmul.f32 %v169, 0.5
    %v173 = vmul.f32 %v169, 0.70710677
    %v174 = vmul.f32 %v173, %v173
    %v175 = vmin.f32 16.0, %v174
    %v176 = vmul.f32 %v175, 2.1237322e-06
    %v177 = vadd.f32 %v176, 0.00028619796
    %v178 = vmul.f32 %v175, %v177
    %v179 = vadd.f32 %v178, 0.0036580483
    %v180 = vmul.f32 %v175, %v179
    %v181 = vadd.f32 %v180, 0.05243302
    %v182 = vmul.f32 %v175, %v181
    %v183 = vadd.f32 %v182, 0.18741608
    %v184 = vmul.f32 %v175, %v183
    %v185 = vadd.f32 %v184, 1.1283791
    %v186 = vmul.f32 %v173, %v185
    %v187 = vmul.f32 %v175, 3.8918573e-05
    %v188 = vadd.f32 %v187, 0.001143296
    %v189 = vmul.f32 %v175, %v188
    %v190 = vadd.f32 %v189, 0.014752088
    %v191 = vmul.f32 %v175, %v190
    %v192 = vadd.f32 %v191, 0.112945676
    %v193 = vmul.f32 %v175, %v192
    %v194 = vadd.f32 %v193, 0.4994258
    %v195 = vmul.f32 %v175, %v194
    %v196 = vadd.f32 %v195, 1.0
    %v197 = vrcp.pop %v196
    %v198 = vmul.f32 %v196, %v197
    %v199 = vsub.f32 1.0, %v198
    %v200 = vmul.f32 %v197, %v199
    %v201 = vadd.f32 %v197, %v200
    %vm202 = vweird.f32 %v196
    %vm203 = vweird.f32 %v197
    %vm204 = vmor %vm202, %vm203
    %v205 = vsel %vm204, %v197, %v201
    %v206 = vand.u32 2147483647, %v196
    %vm207 = vcmp.eq.f32.partialorder %v206, 8.507059e+37
    %v208 = vand.u32 %v196, 2147483648
    %v209 = vor.u32 1.1754944e-38, %v208
    %v210 = vsel %vm207, %v209, %v205
    %v211 = vmul.f32 %v186, %v210
    %v212 = vmin.f32 %v211, 1.0
    %v213 = vmax.f32 %v212, -1.0
    %v214 = vadd.f32 %v213, 1.0
    %v215 = vmul.f32 %v172, %v214
    %v216 = vpack.c.bf16 %v215, %v215
    %v217 = vld [vmem:[%s7] sm:$0xf]
    %v218 = vld [vmem:[%s7 + $0x4] sm:$0xf]
    %v219 = vld [vmem:[%s8] sm:$0xf]
    %v220 = vld [vmem:[%s8 + $0x4] sm:$0xf]
    %v221 = vld [vmem:[%s8 + $0x8] sm:$0xf]
    %v222 = vld [vmem:[%s8 + $0xc] sm:$0xf]
    %v227 = vunpack.c.l.b16 %v219
    %v228 = vunpack.c.l.b16 %v220
    %v229 = vunpack.c.l.b16 %v221
    %v230 = vunpack.c.l.b16 %v222
    %v231 = vpack.c.b16 %v228, %v227
    %v232 = vpack.c.b16 %v230, %v229
    %235 = vmatpush.bf16.msra.mxu0 0
    %236 = vmatpush.bf16.msra.mxu0 0
    %237 = vmatpush.bf16.msra.mxu0 0
    %238 = vmatpush.bf16.msra.mxu0 0
    %239 = vmatpush.bf16.msra.mxu0 0
    %240 = vmatpush.bf16.msra.mxu0 0
    %241 = vmatpush.bf16.msra.mxu0 %v232
    %242 = vmatpush.bf16.msra.mxu0 %v231
    %243 = vmatmul.bf16.gmra.mxu0 %v61
    %v244 = vpop.f32.mrf.mxu0
    %v245 = vadd.f32 0.0, %v244
    %v246 = vpop.f32.mrf.mxu0
    %247 = vdwg.mxu0
    %v250 = vunpack.c.l.b16 %v217
    %v251 = vunpack.c.l.b16 %v218
    %v252 = vpack.c.b16 %v251, %v250
    %vm254 = vcmask 130048
    %v256 = vsel %vm254, %v216, 0
    %258 = vmatpush.bf16.msra.mxu0 0
    %259 = vmatpush.bf16.msra.mxu0 0
    %260 = vmatpush.bf16.msra.mxu0 0
    %261 = vmatpush.bf16.msra.mxu0 0
    %262 = vmatpush.bf16.msra.mxu0 0
    %263 = vmatpush.bf16.msra.mxu0 0
    %264 = vmatpush.bf16.msra.mxu0 0
    %265 = vmatpush.bf16.msra.mxu0 %v252
    %266 = vmatmul.bf16.gmra.mxu0 %v256
    %v267 = vpop.f32.mrf.mxu0
    %v268 = vadd.f32 %v245, %v267
    %v269 = vpop.f32.mrf.mxu0
    %270 = vdwg.mxu0
    %v271 = vld [vmem:[%s9] sm:$0x1]
    %v273 = vperm.slane %v271, 0
    %v275 = vadd.f32 %v268, %v273
    %276 = vst.msk [vmem:[#allocation2] sm:$0xff] %vm254, %v275
    // Predicated region
    $region42: #{tpu_custom_call.1} parent=1 // pred_check
      _
    $region43: #{tpu_custom_call.1} parent=1 // pred_check_branch
      %278 = sbr.rel (0) target = $region45
    $region44: #{tpu_custom_call.1} parent=1 // pred_region
      %280 = vsyncadd [#allocation3], 0
      %s282 = sshll.u32 [#allocation2], 4
      %s283 = int_to_ptr.vmem [resolvable:$true] %s282
      %s284 = sshll.u32 %s10, 4
      %s285 = int_to_ptr.hbm [resolvable:$true] %s284
      %287 = dma.vmem_to_hbm [thread:$0]  %s283, 128, %s285, [#allocation3]
    $region45: #{tpu_custom_call.1} parent=1 // pred_fallthru
      _
    // Predicated region
    $region46: #{tpu_custom_call.1} parent=1 // pred_check
      _
    $region47: #{tpu_custom_call.1} parent=1 // pred_check_branch
      %289 = sbr.rel (0) target = $region49
    $region48: #{tpu_custom_call.1} parent=1 // pred_region
      %291 = dma.done [#allocation3], 128
    $region49: #{tpu_custom_call.1} parent=1 // pred_fallthru
      _
    %292 = vsyncpa [#allocation3], 1

</llo_original>
